<compile_context>
chip_gen: v6e
topology: v6e:2x2x1
jax: 0.10.0
libtpu: 0.0.40
codegen_flags: <defaults>
</compile_context>

<pallas_src>
from functools import partial

import jax
import jax.numpy as jnp
from jax.experimental import pallas as pl
from jax.experimental.pallas import tpu as pltpu

_LANE = 128


def _round_up(n, m):
    return ((n + m - 1) // m) * m


def _pad_to(x, shape):
    return jnp.pad(x, [(0, s - d) for d, s in zip(x.shape, shape)])


def _make_kernel(B, T, Hp, Vp):
    def kernel(x_ref, w_ih_ref, w_hh_ref, b_h_ref, w_fc_ref, b_fc_ref, out_ref):
        # x_ref:   [T*B, Hp] bf16, time-major rows (row = t*B + b), already gathered
        # w_ih/w_hh: [Hp, Hp] bf16 (x @ W layout); b_h: [1, Hp] f32 (= b_ih + b_hh)
        # w_fc:    [Hp, Vp] bf16; b_fc: [1, Vp] f32
        # out_ref: [T*B, Vp] f32 logits, time-major (single lane-dense slab)

        # Hoisted input projection: one [TB,Hp]@[Hp,Hp] bf16 MXU matmul, f32 acc.
        xw = jnp.dot(x_ref[...], w_ih_ref[...],
                     preferred_element_type=jnp.float32) + b_h_ref[...]   # [TB, Hp] f32

        w_hh = w_hh_ref[...]                                              # [Hp, Hp] bf16

        # Serial recurrence: only (bf16 h) @ W_hh + tanh on the critical path.
        # t = 0: initial hidden state is zero -> skip that matmul entirely.
        h = jnp.tanh(xw[0:B])                                             # [B, Hp] f32
        hs = [h]
        for t in range(1, T):                     # fully unrolled, static slices
            hw = jnp.dot(h.astype(jnp.bfloat16), w_hh,
                         preferred_element_type=jnp.float32)              # [B, Hp] f32
            h = jnp.tanh(xw[t * B:(t + 1) * B] + hw)
            hs.append(h)

        # Hidden states stayed in registers (~8 vregs); one sublane-concat, then the
        # hoisted output projection and a single unmasked lane-dense store.
        h_tm = jnp.concatenate(hs, axis=0)                                # [TB, Hp] f32
        logits = jnp.dot(h_tm.astype(jnp.bfloat16), w_fc_ref[...],
                         preferred_element_type=jnp.float32) + b_fc_ref[...]
        out_ref[...] = logits                                             # [TB, Vp] f32

    return kernel


def prepare_params(params, mxu_dtype=jnp.bfloat16):
    """One-time pad / bias-combine / bf16 cast of the weights (call OUTSIDE the
    jitted forward so no per-call HBM pad traffic).

    Zero padding keeps the math exact: padded hidden lanes stay exactly 0 through
    tanh because the padded rows/cols of every weight (and bias) are exactly 0,
    and 0 is exactly representable in bf16.
    """
    emb = params["embedding"]                     # [V, H] f32
    V, H = emb.shape
    Hp = _round_up(H, _LANE)
    Vp = _round_up(V, _LANE)
    b_h = (params["b_ih"] + params["b_hh"])[None, :]   # combined RNN bias, [1, H]
    return {
        # Gather source: only H is padded (the vocab axis is gathered, not tiled).
        "embedding": _pad_to(emb, (V, Hp)).astype(mxu_dtype),
        "w_ih": _pad_to(params["w_ih"], (Hp, Hp)).astype(mxu_dtype),
        "w_hh": _pad_to(params["w_hh"], (Hp, Hp)).astype(mxu_dtype),
        "b_h": _pad_to(b_h, (1, Hp)).astype(jnp.float32),
        "w_fc": _pad_to(params["w_fc"], (Hp, Vp)).astype(mxu_dtype),
        "b_fc": _pad_to(params["b_fc"][None, :], (1, Vp)).astype(jnp.float32),
    }


@partial(jax.jit, static_argnames=("vocab_size",))
def chatbot_forward(token_ids, prepared, *, vocab_size):
    """token_ids [B, T] int32 -> logits [B, T, V] f32 (embedding -> RNN -> fc)."""
    emb = prepared["embedding"]                  # [V, Hp] bf16
    w_ih, w_hh = prepared["w_ih"], prepared["w_hh"]
    b_h = prepared["b_h"]
    w_fc, b_fc = prepared["w_fc"], prepared["b_fc"]

    B, T = token_ids.shape
    Hp = emb.shape[1]
    Vp = w_fc.shape[1]
    TB = T * B

    # Real gather (no one-hot, table never needs to be VMEM-resident). Out-of-range
    # ids clamp to the last row (deliberate; nn.Embedding would raise instead).
    ids_tm = token_ids.T.reshape(TB)                           # time-major row order
    x_tm = jnp.take(emb, ids_tm, axis=0, mode="clip")          # [TB, Hp] bf16

    vmem = pltpu.MemorySpace.VMEM
    logits_tm = pl.pallas_call(
        _make_kernel(B, T, Hp, Vp),
        out_shape=jax.ShapeDtypeStruct((TB, Vp), jnp.float32),
        in_specs=[pl.BlockSpec(memory_space=vmem)] * 6,
        out_specs=pl.BlockSpec(memory_space=vmem),
    )(x_tm, w_ih, w_hh, b_h, w_fc, b_fc)

    # Tiny (32 KiB) corner turn + un-pad of the vocab axis, done on the host/XLA side.
    return logits_tm.reshape(T, B, Vp).transpose(1, 0, 2)[:, :, :vocab_size]


@partial(jax.jit, static_argnames=("match_kernel_precision",))
def reference_forward(token_ids, params, *, match_kernel_precision=False):
    """Pure-JAX reference of embedding -> RNN(tanh, batch_first) -> Linear.

    match_kernel_precision=True rounds the MXU operands to bf16 exactly like the
    Pallas kernel (f32 accumulation / bias / tanh), so that comparison can use a
    tight tolerance that still catches structural/padding bugs.
    """
    if match_kernel_precision:
        cast = lambda a: a.astype(jnp.bfloat16)
        prec = None
    else:
        cast = lambda a: a
        prec = jax.lax.Precision.HIGHEST

    emb = cast(params["embedding"])
    w_ih, w_hh, w_fc = cast(params["w_ih"]), cast(params["w_hh"]), cast(params["w_fc"])
    b_h = (params["b_ih"] + params["b_hh"])[None, :]
    b_fc = params["b_fc"][None, :]

    x = jnp.take(emb, token_ids, axis=0)                       # [B, T, H]
    B, T, H = x.shape

    def step(h, x_t):
        pre = jnp.dot(x_t, w_ih, preferred_element_type=jnp.float32,
                      precision=prec) + b_h
        pre = pre + jnp.dot(cast(h), w_hh, preferred_element_type=jnp.float32,
                            precision=prec)
        h_new = jnp.tanh(pre)
        y = jnp.dot(cast(h_new), w_fc, preferred_element_type=jnp.float32,
                    precision=prec) + b_fc
        return h_new, y

    h0 = jnp.zeros((B, H), jnp.float32)
    _, ys = jax.lax.scan(step, h0, jnp.transpose(x, (1, 0, 2)))
    return jnp.transpose(ys, (1, 0, 2))                        # [B, T, V]


def make_params(vocab_size, hidden_size, key):
    """Deterministic synthetic parameters (shapes match the nn.Module __init__)."""
    ks = jax.random.split(key, 7)
    scale = 1.0 / jnp.sqrt(hidden_size)
    embedding = jax.random.normal(ks[0], (vocab_size, hidden_size), jnp.float32)
    # PyTorch stores W_ih/W_hh/W_fc as [out, in] used as h @ W.T; we pre-transpose
    # once so the kernel computes x @ W directly (equivalent math).
    w_ih = jax.random.uniform(ks[1], (hidden_size, hidden_size), jnp.float32,
                              -scale, scale)
    w_hh = jax.random.uniform(ks[2], (hidden_size, hidden_size), jnp.float32,
                              -scale, scale)
    b_ih = jax.random.uniform(ks[3], (hidden_size,), jnp.float32, -scale, scale)
    b_hh = jax.random.uniform(ks[4], (hidden_size,), jnp.float32, -scale, scale)
    w_fc = jax.random.uniform(ks[5], (hidden_size, vocab_size), jnp.float32,
                              -scale, scale)
    b_fc = jax.random.uniform(ks[6], (vocab_size,), jnp.float32, -scale, scale)
    return {
        "embedding": embedding,
        "w_ih": w_ih, "w_hh": w_hh, "b_ih": b_ih, "b_hh": b_hh,
        "w_fc": w_fc, "b_fc": b_fc,
    }


if __name__ == "__main__":
    VOCAB = 32
    HIDDEN = 32
    BATCH = 8     # TODO(synk): recurrence throughput is nearly flat in B up to ~128
    SEQ = 8       #             rows; pack more sequences per step when the workload allows.

    key = jax.random.PRNGKey(0)
    k_tok, k_par = jax.random.split(key)
    params = make_params(VOCAB, HIDDEN, k_par)
    token_ids = jax.random.randint(k_tok, (BATCH, SEQ), 0, VOCAB, dtype=jnp.int32)

    prepared = prepare_params(params)            # one-time pad / cast / layout
    logits = jax.block_until_ready(
        chatbot_forward(token_ids, prepared, vocab_size=VOCAB))
    assert logits.shape == (BATCH, SEQ, VOCAB)

    # Structural check: identical bf16-operand math -> tight tolerance (any padding
    # or indexing bug would show up as an O(0.1)+ error).
    ref_matched = jax.block_until_ready(
        reference_forward(token_ids, params, match_kernel_precision=True))
    err_m = float(jnp.max(jnp.abs(logits - ref_matched)))
    assert jnp.allclose(logits, ref_matched, rtol=5e-3, atol=5e-3), err_m

    # Numerical check vs the exact f32 math: deliberately looser; it bounds the
    # error of the adopted bf16-operand MXU optimization.
    ref_exact = jax.block_until_ready(
        reference_forward(token_ids, params, match_kernel_precision=False))
    err_e = float(jnp.max(jnp.abs(logits - ref_exact)))
    assert jnp.allclose(logits, ref_exact, rtol=5e-2, atol=5e-2), err_e

    print("KERNEL_OK")
</pallas_src>

<mosaic_0001>
module attributes {stable_mosaic.version = 11 : i64} {
  func.func @kernel(%arg0: memref<64x128xbf16, #tpu.memory_space<vmem>>, %arg1: memref<128x128xbf16, #tpu.memory_space<vmem>>, %arg2: memref<128x128xbf16, #tpu.memory_space<vmem>>, %arg3: memref<1x128xf32, #tpu.memory_space<vmem>>, %arg4: memref<128x128xbf16, #tpu.memory_space<vmem>>, %arg5: memref<1x128xf32, #tpu.memory_space<vmem>>, %arg6: memref<64x128xf32, #tpu.memory_space<vmem>>) attributes {dimension_semantics = [], scalar_prefetch = 0 : i64, scratch_operands = 0 : i64, tpu.core_type = #tpu.core_type<tc>} {
    %c0 = arith.constant 0 : index
    %c0_0 = arith.constant 0 : index
    %0 = vector.load %arg0[%c0, %c0_0] : memref<64x128xbf16, #tpu.memory_space<vmem>>, vector<64x128xbf16>
    %c0_1 = arith.constant 0 : index
    %c0_2 = arith.constant 0 : index
    %1 = vector.load %arg1[%c0_1, %c0_2] : memref<128x128xbf16, #tpu.memory_space<vmem>>, vector<128x128xbf16>
    %cst = arith.constant dense<0.000000e+00> : vector<64x128xf32>
    %2 = tpu.matmul %0, %1, %cst {dimension_numbers = #tpu.dot_dimension_numbers<[1], [0], [0], [1], [0, 0, 1, 1], [], []>} : vector<64x128xbf16>, vector<128x128xbf16>, vector<64x128xf32> -> vector<64x128xf32>
    %c0_3 = arith.constant 0 : index
    %c0_4 = arith.constant 0 : index
    %3 = vector.load %arg3[%c0_3, %c0_4] : memref<1x128xf32, #tpu.memory_space<vmem>>, vector<1x128xf32>
    %4 = vector.broadcast %3 : vector<1x128xf32> to vector<64x128xf32>
    %5 = arith.addf %2, %4 : vector<64x128xf32>
    %c0_5 = arith.constant 0 : index
    %c0_6 = arith.constant 0 : index
    %6 = vector.load %arg2[%c0_5, %c0_6] : memref<128x128xbf16, #tpu.memory_space<vmem>>, vector<128x128xbf16>
    %7 = vector.extract_strided_slice %5 {offsets = [0, 0], sizes = [8, 128], strides = [1, 1]} : vector<64x128xf32> to vector<8x128xf32>
    %8 = math.tanh %7 : vector<8x128xf32>
    %9 = arith.truncf %8 : vector<8x128xf32> to vector<8x128xbf16>
    %cst_7 = arith.constant dense<0.000000e+00> : vector<8x128xf32>
    %10 = tpu.matmul %9, %6, %cst_7 {dimension_numbers = #tpu.dot_dimension_numbers<[1], [0], [0], [1], [0, 0, 1, 1], [], []>} : vector<8x128xbf16>, vector<128x128xbf16>, vector<8x128xf32> -> vector<8x128xf32>
    %11 = vector.extract_strided_slice %5 {offsets = [8, 0], sizes = [8, 128], strides = [1, 1]} : vector<64x128xf32> to vector<8x128xf32>
    %12 = arith.addf %11, %10 : vector<8x128xf32>
    %13 = math.tanh %12 : vector<8x128xf32>
    %14 = arith.truncf %13 : vector<8x128xf32> to vector<8x128xbf16>
    %cst_8 = arith.constant dense<0.000000e+00> : vector<8x128xf32>
    %15 = tpu.matmul %14, %6, %cst_8 {dimension_numbers = #tpu.dot_dimension_numbers<[1], [0], [0], [1], [0, 0, 1, 1], [], []>} : vector<8x128xbf16>, vector<128x128xbf16>, vector<8x128xf32> -> vector<8x128xf32>
    %16 = vector.extract_strided_slice %5 {offsets = [16, 0], sizes = [8, 128], strides = [1, 1]} : vector<64x128xf32> to vector<8x128xf32>
    %17 = arith.addf %16, %15 : vector<8x128xf32>
    %18 = math.tanh %17 : vector<8x128xf32>
    %19 = arith.truncf %18 : vector<8x128xf32> to vector<8x128xbf16>
    %cst_9 = arith.constant dense<0.000000e+00> : vector<8x128xf32>
    %20 = tpu.matmul %19, %6, %cst_9 {dimension_numbers = #tpu.dot_dimension_numbers<[1], [0], [0], [1], [0, 0, 1, 1], [], []>} : vector<8x128xbf16>, vector<128x128xbf16>, vector<8x128xf32> -> vector<8x128xf32>
    %21 = vector.extract_strided_slice %5 {offsets = [24, 0], sizes = [8, 128], strides = [1, 1]} : vector<64x128xf32> to vector<8x128xf32>
    %22 = arith.addf %21, %20 : vector<8x128xf32>
    %23 = math.tanh %22 : vector<8x128xf32>
    %24 = arith.truncf %23 : vector<8x128xf32> to vector<8x128xbf16>
    %cst_10 = arith.constant dense<0.000000e+00> : vector<8x128xf32>
    %25 = tpu.matmul %24, %6, %cst_10 {dimension_numbers = #tpu.dot_dimension_numbers<[1], [0], [0], [1], [0, 0, 1, 1], [], []>} : vector<8x128xbf16>, vector<128x128xbf16>, vector<8x128xf32> -> vector<8x128xf32>
    %26 = vector.extract_strided_slice %5 {offsets = [32, 0], sizes = [8, 128], strides = [1, 1]} : vector<64x128xf32> to vector<8x128xf32>
    %27 = arith.addf %26, %25 : vector<8x128xf32>
    %28 = math.tanh %27 : vector<8x128xf32>
    %29 = arith.truncf %28 : vector<8x128xf32> to vector<8x128xbf16>
    %cst_11 = arith.constant dense<0.000000e+00> : vector<8x128xf32>
    %30 = tpu.matmul %29, %6, %cst_11 {dimension_numbers = #tpu.dot_dimension_numbers<[1], [0], [0], [1], [0, 0, 1, 1], [], []>} : vector<8x128xbf16>, vector<128x128xbf16>, vector<8x128xf32> -> vector<8x128xf32>
    %31 = vector.extract_strided_slice %5 {offsets = [40, 0], sizes = [8, 128], strides = [1, 1]} : vector<64x128xf32> to vector<8x128xf32>
    %32 = arith.addf %31, %30 : vector<8x128xf32>
    %33 = math.tanh %32 : vector<8x128xf32>
    %34 = arith.truncf %33 : vector<8x128xf32> to vector<8x128xbf16>
    %cst_12 = arith.constant dense<0.000000e+00> : vector<8x128xf32>
    %35 = tpu.matmul %34, %6, %cst_12 {dimension_numbers = #tpu.dot_dimension_numbers<[1], [0], [0], [1], [0, 0, 1, 1], [], []>} : vector<8x128xbf16>, vector<128x128xbf16>, vector<8x128xf32> -> vector<8x128xf32>
    %36 = vector.extract_strided_slice %5 {offsets = [48, 0], sizes = [8, 128], strides = [1, 1]} : vector<64x128xf32> to vector<8x128xf32>
    %37 = arith.addf %36, %35 : vector<8x128xf32>
    %38 = math.tanh %37 : vector<8x128xf32>
    %39 = arith.truncf %38 : vector<8x128xf32> to vector<8x128xbf16>
    %cst_13 = arith.constant dense<0.000000e+00> : vector<8x128xf32>
    %40 = tpu.matmul %39, %6, %cst_13 {dimension_numbers = #tpu.dot_dimension_numbers<[1], [0], [0], [1], [0, 0, 1, 1], [], []>} : vector<8x128xbf16>, vector<128x128xbf16>, vector<8x128xf32> -> vector<8x128xf32>
    %41 = vector.extract_strided_slice %5 {offsets = [56, 0], sizes = [8, 128], strides = [1, 1]} : vector<64x128xf32> to vector<8x128xf32>
    %42 = arith.addf %41, %40 : vector<8x128xf32>
    %43 = math.tanh %42 : vector<8x128xf32>
    %44 = tpu.concatenate %8, %13, %18, %23, %28, %33, %38, %43 in 0 : vector<8x128xf32>, vector<8x128xf32>, vector<8x128xf32>, vector<8x128xf32>, vector<8x128xf32>, vector<8x128xf32>, vector<8x128xf32>, vector<8x128xf32> -> vector<64x128xf32>
    %45 = arith.truncf %44 : vector<64x128xf32> to vector<64x128xbf16>
    %c0_14 = arith.constant 0 : index
    %c0_15 = arith.constant 0 : index
    %46 = vector.load %arg4[%c0_14, %c0_15] : memref<128x128xbf16, #tpu.memory_space<vmem>>, vector<128x128xbf16>
    %cst_16 = arith.constant dense<0.000000e+00> : vector<64x128xf32>
    %47 = tpu.matmul %45, %46, %cst_16 {dimension_numbers = #tpu.dot_dimension_numbers<[1], [0], [0], [1], [0, 0, 1, 1], [], []>} : vector<64x128xbf16>, vector<128x128xbf16>, vector<64x128xf32> -> vector<64x128xf32>
    %c0_17 = arith.constant 0 : index
    %c0_18 = arith.constant 0 : index
    %48 = vector.load %arg5[%c0_17, %c0_18] : memref<1x128xf32, #tpu.memory_space<vmem>>, vector<1x128xf32>
    %49 = vector.broadcast %48 : vector<1x128xf32> to vector<64x128xf32>
    %50 = arith.addf %47, %49 : vector<64x128xf32>
    %c0_19 = arith.constant 0 : index
    %c0_20 = arith.constant 0 : index
    %51 = vector.load %arg6[%c0_19, %c0_20] : memref<64x128xf32, #tpu.memory_space<vmem>>, vector<64x128xf32>
    tpu.vector_store %arg6[%c0_19, %c0_20], %50 {strides = array<i32>} : memref<64x128xf32, #tpu.memory_space<vmem>>, vector<64x128xf32>,
    return
  }
}

</mosaic_0001>

<llo_original>
// kernel: chatbot_forward.1
$region0: #{chatbot_forward.1}
  #allocation0 [shape = 'u32[]', space=smem, size = 0x4, offset = 0x4, fixed_abs, tag = 'smem constant byte address 0x4 - core index']
  #allocation1 [shape = 'u32[144,128]{1,0:T(1,128)}', space=vmem, size = 0x12000, scoped, tag = 'internal scratch']
  %s0 = inlined_call_operand.vmem [shape: bf16[64,128], index: 0, kind: input, shape index: {}]
  %s1 = inlined_call_operand.vmem [shape: bf16[128,128], index: 1, kind: input, shape index: {}]
  %s2 = inlined_call_operand.vmem [shape: bf16[128,128], index: 2, kind: input, shape index: {}]
  %s3 = inlined_call_operand.vmem [shape: f32[1,128], index: 3, kind: input, shape index: {}]
  %s4 = inlined_call_operand.vmem [shape: bf16[128,128], index: 4, kind: input, shape index: {}]
  %s5 = inlined_call_operand.vmem [shape: f32[1,128], index: 5, kind: input, shape index: {}]
  %s6 = inlined_call_operand.vmem [shape: f32[64,128], index: 6, kind: output, shape index: {}]
  %s7 = sld [smem:[#allocation0]]
  $region34: #{chatbot_forward.1} parent=0
    _
  %s9 = ssub.s32 1, %s7
  %s10 = scalar_select 0, %s9, %s7
  // Predicated region
  $region2: #{chatbot_forward.1} parent=0 // pred_check
    _
  $region3: #{chatbot_forward.1} parent=0 // pred_check_branch
    %12 = sbr.rel (0) target = $region5
  $region4: #{chatbot_forward.1} parent=0 // pred_region
    _
  $region5: #{chatbot_forward.1} parent=0 // pred_fallthru
    _
  // Predicated region
  $region6: #{chatbot_forward.1} parent=0 // pred_check
    _
  $region7: #{chatbot_forward.1} parent=0 // pred_check_branch
    %14 = sbr.rel (0) target = $region9
  $region8: #{chatbot_forward.1} parent=0 // pred_region
    _
  $region9: #{chatbot_forward.1} parent=0 // pred_fallthru
    _
  // Predicated region
  $region10: #{chatbot_forward.1} parent=0 // pred_check
    _
  $region11: #{chatbot_forward.1} parent=0 // pred_check_branch
    %16 = sbr.rel (0) target = $region13
  $region12: #{chatbot_forward.1} parent=0 // pred_region
    _
  $region13: #{chatbot_forward.1} parent=0 // pred_fallthru
    _
  // Predicated region
  $region14: #{chatbot_forward.1} parent=0 // pred_check
    _
  $region15: #{chatbot_forward.1} parent=0 // pred_check_branch
    %18 = sbr.rel (0) target = $region17
  $region16: #{chatbot_forward.1} parent=0 // pred_region
    _
  $region17: #{chatbot_forward.1} parent=0 // pred_fallthru
    _
  // Predicated region
  $region18: #{chatbot_forward.1} parent=0 // pred_check
    _
  $region19: #{chatbot_forward.1} parent=0 // pred_check_branch
    %20 = sbr.rel (0) target = $region21
  $region20: #{chatbot_forward.1} parent=0 // pred_region
    _
  $region21: #{chatbot_forward.1} parent=0 // pred_fallthru
    _
  // Predicated region
  $region22: #{chatbot_forward.1} parent=0 // pred_check
    _
  $region23: #{chatbot_forward.1} parent=0 // pred_check_branch
    %22 = sbr.rel (0) target = $region25
  $region24: #{chatbot_forward.1} parent=0 // pred_region
    _
  $region25: #{chatbot_forward.1} parent=0 // pred_fallthru
    _
  %v24 = vld [vmem:[%s0] sm:$0xf]
  %v25 = vld [vmem:[%s0 + $0x4] sm:$0xf]
  %v26 = vld [vmem:[%s0 + $0x8] sm:$0xf]
  %v27 = vld [vmem:[%s0 + $0xc] sm:$0xf]
  %v28 = vld [vmem:[%s0 + $0x10] sm:$0xf]
  %v29 = vld [vmem:[%s0 + $0x14] sm:$0xf]
  %v30 = vld [vmem:[%s0 + $0x18] sm:$0xf]
  %v31 = vld [vmem:[%s0 + $0x1c] sm:$0xf]
  %v32 = vld [vmem:[%s1] sm:$0xf]
  %v33 = vld [vmem:[%s1 + $0x4] sm:$0xf]
  %v34 = vld [vmem:[%s1 + $0x8] sm:$0xf]
  %v35 = vld [vmem:[%s1 + $0xc] sm:$0xf]
  %v36 = vld [vmem:[%s1 + $0x10] sm:$0xf]
  %v37 = vld [vmem:[%s1 + $0x14] sm:$0xf]
  %v38 = vld [vmem:[%s1 + $0x18] sm:$0xf]
  %v39 = vld [vmem:[%s1 + $0x1c] sm:$0xf]
  %v40 = vld [vmem:[%s1 + $0x20] sm:$0xf]
  %v41 = vld [vmem:[%s1 + $0x24] sm:$0xf]
  %v42 = vld [vmem:[%s1 + $0x28] sm:$0xf]
  %v43 = vld [vmem:[%s1 + $0x2c] sm:$0xf]
  %v44 = vld [vmem:[%s1 + $0x30] sm:$0xf]
  %v45 = vld [vmem:[%s1 + $0x34] sm:$0xf]
  %v46 = vld [vmem:[%s1 + $0x38] sm:$0xf]
  %v47 = vld [vmem:[%s1 + $0x3c] sm:$0xf]
  %v48 = vld [vmem:[%s3] sm:$0x1]
  %v50 = vlaneseq
  %v51 = vshrl.u32 %v50, 7
  %v52 = vsub.s32 0, %v51
  %v53 = vrot.slane %v48, %v52
  %v63 = vunpack.c.l.b16 %v24
  %v64 = vunpack.c.l.b16 %v25
  %v65 = vunpack.c.l.b16 %v26
  %v66 = vunpack.c.l.b16 %v27
  %v67 = vunpack.c.l.b16 %v28
  %v68 = vunpack.c.l.b16 %v29
  %v69 = vunpack.c.l.b16 %v30
  %v70 = vunpack.c.l.b16 %v31
  %v71 = vpack.c.b16 %v64, %v63
  %v72 = vpack.c.b16 %v66, %v65
  %v73 = vpack.c.b16 %v68, %v67
  %v74 = vpack.c.b16 %v70, %v69
  %v95 = vunpack.c.l.b16 %v32
  %v96 = vunpack.c.l.b16 %v33
  %v97 = vunpack.c.l.b16 %v34
  %v98 = vunpack.c.l.b16 %v35
  %v99 = vunpack.c.l.b16 %v36
  %v100 = vunpack.c.l.b16 %v37
  %v101 = vunpack.c.l.b16 %v38
  %v102 = vunpack.c.l.b16 %v39
  %v103 = vunpack.c.l.b16 %v40
  %v104 = vunpack.c.l.b16 %v41
  %v105 = vunpack.c.l.b16 %v42
  %v106 = vunpack.c.l.b16 %v43
  %v107 = vunpack.c.l.b16 %v44
  %v108 = vunpack.c.l.b16 %v45
  %v109 = vunpack.c.l.b16 %v46
  %v110 = vunpack.c.l.b16 %v47
  %v111 = vpack.c.b16 %v96, %v95
  %v112 = vpack.c.b16 %v98, %v97
  %v113 = vpack.c.b16 %v100, %v99
  %v114 = vpack.c.b16 %v102, %v101
  %v115 = vpack.c.b16 %v104, %v103
  %v116 = vpack.c.b16 %v106, %v105
  %v117 = vpack.c.b16 %v108, %v107
  %v118 = vpack.c.b16 %v110, %v109
  %127 = vmatprep.subr.bf16.mxu0 0
  %128 = vmatpush1.bf16.msra.mxu0 %v118
  %129 = vmatprep.subr.bf16.mxu0 0
  %130 = vmatpush1.bf16.msra.mxu0 %v117
  %131 = vmatprep.subr.bf16.mxu0 0
  %132 = vmatpush1.bf16.msra.mxu0 %v116
  %133 = vmatprep.subr.bf16.mxu0 0
  %134 = vmatpush1.bf16.msra.mxu0 %v115
  %135 = vmatprep.subr.bf16.mxu0 0
  %136 = vmatpush1.bf16.msra.mxu0 %v114
  %137 = vmatprep.subr.bf16.mxu0 0
  %138 = vmatpush1.bf16.msra.mxu0 %v113
  %139 = vmatprep.subr.bf16.mxu0 0
  %140 = vmatpush1.bf16.msra.mxu0 %v112
  %141 = vmatprep.subr.bf16.mxu0 0
  %142 = vmatpush1.bf16.msra.mxu0 %v111
  %143 = vmatprep.subr.bf16.mxu0 0
  %144 = vmatpush2.bf16.msra.mxu0 0
  %145 = vmatprep.subr.bf16.mxu0 0
  %146 = vmatpush2.bf16.msra.mxu0 0
  %147 = vmatprep.subr.bf16.mxu0 0
  %148 = vmatpush2.bf16.msra.mxu0 0
  %149 = vmatprep.subr.bf16.mxu0 0
  %150 = vmatpush2.bf16.msra.mxu0 0
  %151 = vmatprep.subr.bf16.mxu0 0
  %152 = vmatpush2.bf16.msra.mxu0 0
  %153 = vmatprep.subr.bf16.mxu0 0
  %154 = vmatpush2.bf16.msra.mxu0 0
  %155 = vmatprep.subr.bf16.mxu0 0
  %156 = vmatpush2.bf16.msra.mxu0 0
  %157 = vmatprep.subr.bf16.mxu0 0
  %158 = vmatpush2.bf16.msra.mxu0 0
  %159 = vmatprep.mubr.bf16.mxu0 0
  %160 = vmatmul.mubr.bf16.gmra.mxu0 %v71
  %v161 = vpop.f32.mrf.mxu0
  %v162 = vadd.f32 %v53, %v161
  %v163 = vpop.f32.mrf.mxu0
  %v164 = vpop.f32.mrf.mxu0
  %v165 = vadd.f32 %v53, %v164
  %v166 = vpop.f32.mrf.mxu0
  %167 = vmatprep.mubr.bf16.mxu0 0
  %168 = vmatmul.mubr.bf16.gmra.mxu0 %v72
  %v169 = vpop.f32.mrf.mxu0
  %v170 = vadd.f32 %v53, %v169
  %v171 = vpop.f32.mrf.mxu0
  %v172 = vpop.f32.mrf.mxu0
  %v173 = vadd.f32 %v53, %v172
  %v174 = vpop.f32.mrf.mxu0
  %175 = vmatprep.mubr.bf16.mxu0 0
  %176 = vmatmul.mubr.bf16.gmra.mxu0 %v73
  %v177 = vpop.f32.mrf.mxu0
  %v178 = vadd.f32 %v53, %v177
  %v179 = vpop.f32.mrf.mxu0
  %v180 = vpop.f32.mrf.mxu0
  %v181 = vadd.f32 %v53, %v180
  %v182 = vpop.f32.mrf.mxu0
  %183 = vmatprep.mubr.bf16.mxu0 0
  %184 = vmatmul.mubr.bf16.gmra.mxu0 %v74
  %v185 = vpop.f32.mrf.mxu0
  %v186 = vadd.f32 %v53, %v185
  %v187 = vpop.f32.mrf.mxu0
  %v188 = vpop.f32.mrf.mxu0
  %v189 = vadd.f32 %v53, %v188
  %v190 = vpop.f32.mrf.mxu0
  %191 = vdwg.mxu0
  %v192 = vld [vmem:[%s2] sm:$0xf]
  %v193 = vld [vmem:[%s2 + $0x4] sm:$0xf]
  %v194 = vld [vmem:[%s2 + $0x8] sm:$0xf]
  %v195 = vld [vmem:[%s2 + $0xc] sm:$0xf]
  %v196 = vld [vmem:[%s2 + $0x10] sm:$0xf]
  %v197 = vld [vmem:[%s2 + $0x14] sm:$0xf]
  %v198 = vld [vmem:[%s2 + $0x18] sm:$0xf]
  %v199 = vld [vmem:[%s2 + $0x1c] sm:$0xf]
  %v200 = vld [vmem:[%s2 + $0x20] sm:$0xf]
  %v201 = vld [vmem:[%s2 + $0x24] sm:$0xf]
  %v202 = vld [vmem:[%s2 + $0x28] sm:$0xf]
  %v203 = vld [vmem:[%s2 + $0x2c] sm:$0xf]
  %v204 = vld [vmem:[%s2 + $0x30] sm:$0xf]
  %v205 = vld [vmem:[%s2 + $0x34] sm:$0xf]
  %v206 = vld [vmem:[%s2 + $0x38] sm:$0xf]
  %v207 = vld [vmem:[%s2 + $0x3c] sm:$0xf]
  %v208 = vtanh.pop %v162
  %v209 = vpack.c.bf16 %v208, %v208
  %v226 = vunpack.c.l.b16 %v192
  %v227 = vunpack.c.l.b16 %v193
  %v228 = vunpack.c.l.b16 %v194
  %v229 = vunpack.c.l.b16 %v195
  %v230 = vunpack.c.l.b16 %v196
  %v231 = vunpack.c.l.b16 %v197
  %v232 = vunpack.c.l.b16 %v198
  %v233 = vunpack.c.l.b16 %v199
  %v234 = vunpack.c.l.b16 %v200
  %v235 = vunpack.c.l.b16 %v201
  %v236 = vunpack.c.l.b16 %v202
  %v237 = vunpack.c.l.b16 %v203
  %v238 = vunpack.c.l.b16 %v204
  %v239 = vunpack.c.l.b16 %v205
  %v240 = vunpack.c.l.b16 %v206
  %v241 = vunpack.c.l.b16 %v207
  %v242 = vpack.c.b16 %v227, %v226
  %v243 = vpack.c.b16 %v229, %v228
  %v244 = vpack.c.b16 %v231, %v230
  %v245 = vpack.c.b16 %v233, %v232
  %v246 = vpack.c.b16 %v235, %v234
  %v247 = vpack.c.b16 %v237, %v236
  %v248 = vpack.c.b16 %v239, %v238
  %v249 = vpack.c.b16 %v241, %v240
  %258 = vmatprep.subr.bf16.mxu0 0
  %259 = vmatpush1.bf16.msra.mxu0 %v249
  %260 = vmatprep.subr.bf16.mxu0 0
  %261 = vmatpush1.bf16.msra.mxu0 %v248
  %262 = vmatprep.subr.bf16.mxu0 0
  %263 = vmatpush1.bf16.msra.mxu0 %v247
  %264 = vmatprep.subr.bf16.mxu0 0
  %265 = vmatpush1.bf16.msra.mxu0 %v246
  %266 = vmatprep.subr.bf16.mxu0 0
  %267 = vmatpush1.bf16.msra.mxu0 %v245
  %268 = vmatprep.subr.bf16.mxu0 0
  %269 = vmatpush1.bf16.msra.mxu0 %v244
  %270 = vmatprep.subr.bf16.mxu0 0
  %271 = vmatpush1.bf16.msra.mxu0 %v243
  %272 = vmatprep.subr.bf16.mxu0 0
  %273 = vmatpush1.bf16.msra.mxu0 %v242
  %274 = vmatprep.subr.bf16.mxu0 0
  %275 = vmatpush2.bf16.msra.mxu0 0
  %276 = vmatprep.subr.bf16.mxu0 0
  %277 = vmatpush2.bf16.msra.mxu0 0
  %278 = vmatprep.subr.bf16.mxu0 0
  %279 = vmatpush2.bf16.msra.mxu0 0
  %280 = vmatprep.subr.bf16.mxu0 0
  %281 = vmatpush2.bf16.msra.mxu0 0
  %282 = vmatprep.subr.bf16.mxu0 0
  %283 = vmatpush2.bf16.msra.mxu0 0
  %284 = vmatprep.subr.bf16.mxu0 0
  %285 = vmatpush2.bf16.msra.mxu0 0
  %286 = vmatprep.subr.bf16.mxu0 0
  %287 = vmatpush2.bf16.msra.mxu0 0
  %288 = vmatprep.subr.bf16.mxu0 0
  %289 = vmatpush2.bf16.msra.mxu0 0
  %290 = vmatprep.mubr.bf16.mxu0 0
  %291 = vmatmul.mubr.bf16.gmra.mxu0 %v209
  %v292 = vpop.f32.mrf.mxu0
  %v293 = vadd.f32 0.0, %v292
  %v294 = vpop.f32.mrf.mxu0
  %v295 = vpop.f32.mrf.mxu0
  %v296 = vpop.f32.mrf.mxu0
  %297 = vdwg.mxu0
  %v298 = vadd.f32 %v165, %v293
  %v299 = vtanh.pop %v298
  %v300 = vpack.c.bf16 %v299, %v299
  %301 = vmatprep.subr.bf16.mxu0 0
  %302 = vmatpush1.bf16.msra.mxu0 %v249
  %303 = vmatprep.subr.bf16.mxu0 0
  %304 = vmatpush1.bf16.msra.mxu0 %v248
  %305 = vmatprep.subr.bf16.mxu0 0
  %306 = vmatpush1.bf16.msra.mxu0 %v247
  %307 = vmatprep.subr.bf16.mxu0 0
  %308 = vmatpush1.bf16.msra.mxu0 %v246
  %309 = vmatprep.subr.bf16.mxu0 0
  %310 = vmatpush1.bf16.msra.mxu0 %v245
  %311 = vmatprep.subr.bf16.mxu0 0
  %312 = vmatpush1.bf16.msra.mxu0 %v244
  %313 = vmatprep.subr.bf16.mxu0 0
  %314 = vmatpush1.bf16.msra.mxu0 %v243
  %315 = vmatprep.subr.bf16.mxu0 0
  %316 = vmatpush1.bf16.msra.mxu0 %v242
  %317 = vmatprep.subr.bf16.mxu0 0
  %318 = vmatpush2.bf16.msra.mxu0 0
  %319 = vmatprep.subr.bf16.mxu0 0
  %320 = vmatpush2.bf16.msra.mxu0 0
  %321 = vmatprep.subr.bf16.mxu0 0
  %322 = vmatpush2.bf16.msra.mxu0 0
  %323 = vmatprep.subr.bf16.mxu0 0
  %324 = vmatpush2.bf16.msra.mxu0 0
  %325 = vmatprep.subr.bf16.mxu0 0
  %326 = vmatpush2.bf16.msra.mxu0 0
  %327 = vmatprep.subr.bf16.mxu0 0
  %328 = vmatpush2.bf16.msra.mxu0 0
  %329 = vmatprep.subr.bf16.mxu0 0
  %330 = vmatpush2.bf16.msra.mxu0 0
  %331 = vmatprep.subr.bf16.mxu0 0
  %332 = vmatpush2.bf16.msra.mxu0 0
  %333 = vmatprep.mubr.bf16.mxu0 0
  %334 = vmatmul.mubr.bf16.gmra.mxu0 %v300
  %v335 = vpop.f32.mrf.mxu0
  %v336 = vadd.f32 0.0, %v335
  %v337 = vpop.f32.mrf.mxu0
  %v338 = vpop.f32.mrf.mxu0
  %v339 = vpop.f32.mrf.mxu0
  %340 = vdwg.mxu0
  %v341 = vadd.f32 %v170, %v336
  %v342 = vtanh.pop %v341
  %v343 = vpack.c.bf16 %v342, %v342
  %344 = vmatprep.subr.bf16.mxu0 0
  %345 = vmatpush1.bf16.msra.mxu0 %v249
  %346 = vmatprep.subr.bf16.mxu0 0
  %347 = vmatpush1.bf16.msra.mxu0 %v248
  %348 = vmatprep.subr.bf16.mxu0 0
  %349 = vmatpush1.bf16.msra.mxu0 %v247
  %350 = vmatprep.subr.bf16.mxu0 0
  %351 = vmatpush1.bf16.msra.mxu0 %v246
  %352 = vmatprep.subr.bf16.mxu0 0
  %353 = vmatpush1.bf16.msra.mxu0 %v245
  %354 = vmatprep.subr.bf16.mxu0 0
  %355 = vmatpush1.bf16.msra.mxu0 %v244
  %356 = vmatprep.subr.bf16.mxu0 0
  %357 = vmatpush1.bf16.msra.mxu0 %v243
  %358 = vmatprep.subr.bf16.mxu0 0
  %359 = vmatpush1.bf16.msra.mxu0 %v242
  %360 = vmatprep.subr.bf16.mxu0 0
  %361 = vmatpush2.bf16.msra.mxu0 0
  %362 = vmatprep.subr.bf16.mxu0 0
  %363 = vmatpush2.bf16.msra.mxu0 0
  %364 = vmatprep.subr.bf16.mxu0 0
  %365 = vmatpush2.bf16.msra.mxu0 0
  %366 = vmatprep.subr.bf16.mxu0 0
  %367 = vmatpush2.bf16.msra.mxu0 0
  %368 = vmatprep.subr.bf16.mxu0 0
  %369 = vmatpush2.bf16.msra.mxu0 0
  %370 = vmatprep.subr.bf16.mxu0 0
  %371 = vmatpush2.bf16.msra.mxu0 0
  %372 = vmatprep.subr.bf16.mxu0 0
  %373 = vmatpush2.bf16.msra.mxu0 0
  %374 = vmatprep.subr.bf16.mxu0 0
  %375 = vmatpush2.bf16.msra.mxu0 0
  %376 = vmatprep.mubr.bf16.mxu0 0
  %377 = vmatmul.mubr.bf16.gmra.mxu0 %v343
  %v378 = vpop.f32.mrf.mxu0
  %v379 = vadd.f32 0.0, %v378
  %v380 = vpop.f32.mrf.mxu0
  %v381 = vpop.f32.mrf.mxu0
  %v382 = vpop.f32.mrf.mxu0
  %383 = vdwg.mxu0
  %v384 = vadd.f32 %v173, %v379
  %v385 = vtanh.pop %v384
  %v386 = vpack.c.bf16 %v385, %v385
  %387 = vmatprep.subr.bf16.mxu0 0
  %388 = vmatpush1.bf16.msra.mxu0 %v249
  %389 = vmatprep.subr.bf16.mxu0 0
  %390 = vmatpush1.bf16.msra.mxu0 %v248
  %391 = vmatprep.subr.bf16.mxu0 0
  %392 = vmatpush1.bf16.msra.mxu0 %v247
  %393 = vmatprep.subr.bf16.mxu0 0
  %394 = vmatpush1.bf16.msra.mxu0 %v246
  %395 = vmatprep.subr.bf16.mxu0 0
  %396 = vmatpush1.bf16.msra.mxu0 %v245
  %397 = vmatprep.subr.bf16.mxu0 0
  %398 = vmatpush1.bf16.msra.mxu0 %v244
  %399 = vmatprep.subr.bf16.mxu0 0
  %400 = vmatpush1.bf16.msra.mxu0 %v243
  %401 = vmatprep.subr.bf16.mxu0 0
  %402 = vmatpush1.bf16.msra.mxu0 %v242
  %403 = vmatprep.subr.bf16.mxu0 0
  %404 = vmatpush2.bf16.msra.mxu0 0
  %405 = vmatprep.subr.bf16.mxu0 0
  %406 = vmatpush2.bf16.msra.mxu0 0
  %407 = vmatprep.subr.bf16.mxu0 0
  %408 = vmatpush2.bf16.msra.mxu0 0
  %409 = vmatprep.subr.bf16.mxu0 0
  %410 = vmatpush2.bf16.msra.mxu0 0
  %411 = vmatprep.subr.bf16.mxu0 0
  %412 = vmatpush2.bf16.msra.mxu0 0
  %413 = vmatprep.subr.bf16.mxu0 0
  %414 = vmatpush2.bf16.msra.mxu0 0
  %415 = vmatprep.subr.bf16.mxu0 0
  %416 = vmatpush2.bf16.msra.mxu0 0
  %417 = vmatprep.subr.bf16.mxu0 0
  %418 = vmatpush2.bf16.msra.mxu0 0
  %419 = vmatprep.mubr.bf16.mxu0 0
  %420 = vmatmul.mubr.bf16.gmra.mxu0 %v386
  %v421 = vpop.f32.mrf.mxu0
  %v422 = vadd.f32 0.0, %v421
  %v423 = vpop.f32.mrf.mxu0
  %v424 = vpop.f32.mrf.mxu0
  %v425 = vpop.f32.mrf.mxu0
  %426 = vdwg.mxu0
  %v427 = vadd.f32 %v178, %v422
  %v428 = vtanh.pop %v427
  %v429 = vpack.c.bf16 %v428, %v428
  %430 = vmatprep.subr.bf16.mxu0 0
  %431 = vmatpush1.bf16.msra.mxu0 %v249
  %432 = vmatprep.subr.bf16.mxu0 0
  %433 = vmatpush1.bf16.msra.mxu0 %v248
  %434 = vmatprep.subr.bf16.mxu0 0
  %435 = vmatpush1.bf16.msra.mxu0 %v247
  %436 = vmatprep.subr.bf16.mxu0 0
  %437 = vmatpush1.bf16.msra.mxu0 %v246
  %438 = vmatprep.subr.bf16.mxu0 0
  %439 = vmatpush1.bf16.msra.mxu0 %v245
  %440 = vmatprep.subr.bf16.mxu0 0
  %441 = vmatpush1.bf16.msra.mxu0 %v244
  %442 = vmatprep.subr.bf16.mxu0 0
  %443 = vmatpush1.bf16.msra.mxu0 %v243
  %444 = vmatprep.subr.bf16.mxu0 0
  %445 = vmatpush1.bf16.msra.mxu0 %v242
  %446 = vmatprep.subr.bf16.mxu0 0
  %447 = vmatpush2.bf16.msra.mxu0 0
  %448 = vmatprep.subr.bf16.mxu0 0
  %449 = vmatpush2.bf16.msra.mxu0 0
  %450 = vmatprep.subr.bf16.mxu0 0
  %451 = vmatpush2.bf16.msra.mxu0 0
  %452 = vmatprep.subr.bf16.mxu0 0
  %453 = vmatpush2.bf16.msra.mxu0 0
  %454 = vmatprep.subr.bf16.mxu0 0
  %455 = vmatpush2.bf16.msra.mxu0 0
  %456 = vmatprep.subr.bf16.mxu0 0
  %457 = vmatpush2.bf16.msra.mxu0 0
  %458 = vmatprep.subr.bf16.mxu0 0
  %459 = vmatpush2.bf16.msra.mxu0 0
  %460 = vmatprep.subr.bf16.mxu0 0
  %461 = vmatpush2.bf16.msra.mxu0 0
  %462 = vmatprep.mubr.bf16.mxu0 0
  %463 = vmatmul.mubr.bf16.gmra.mxu0 %v429
  %v464 = vpop.f32.mrf.mxu0
  %v465 = vadd.f32 0.0, %v464
  %v466 = vpop.f32.mrf.mxu0
  %v467 = vpop.f32.mrf.mxu0
  %v468 = vpop.f32.mrf.mxu0
  %469 = vdwg.mxu0
  %v470 = vadd.f32 %v181, %v465
  %v471 = vtanh.pop %v470
  %v472 = vpack.c.bf16 %v471, %v471
  %473 = vmatprep.subr.bf16.mxu0 0
  %474 = vmatpush1.bf16.msra.mxu0 %v249
  %475 = vmatprep.subr.bf16.mxu0 0
  %476 = vmatpush1.bf16.msra.mxu0 %v248
  %477 = vmatprep.subr.bf16.mxu0 0
  %478 = vmatpush1.bf16.msra.mxu0 %v247
  %479 = vmatprep.subr.bf16.mxu0 0
  %480 = vmatpush1.bf16.msra.mxu0 %v246
  %481 = vmatprep.subr.bf16.mxu0 0
  %482 = vmatpush1.bf16.msra.mxu0 %v245
  %483 = vmatprep.subr.bf16.mxu0 0
  %484 = vmatpush1.bf16.msra.mxu0 %v244
  %485 = vmatprep.subr.bf16.mxu0 0
  %486 = vmatpush1.bf16.msra.mxu0 %v243
  %487 = vmatprep.subr.bf16.mxu0 0
  %488 = vmatpush1.bf16.msra.mxu0 %v242
  %489 = vmatprep.subr.bf16.mxu0 0
  %490 = vmatpush2.bf16.msra.mxu0 0
  %491 = vmatprep.subr.bf16.mxu0 0
  %492 = vmatpush2.bf16.msra.mxu0 0
  %493 = vmatprep.subr.bf16.mxu0 0
  %494 = vmatpush2.bf16.msra.mxu0 0
  %495 = vmatprep.subr.bf16.mxu0 0
  %496 = vmatpush2.bf16.msra.mxu0 0
  %497 = vmatprep.subr.bf16.mxu0 0
  %498 = vmatpush2.bf16.msra.mxu0 0
  %499 = vmatprep.subr.bf16.mxu0 0
  %500 = vmatpush2.bf16.msra.mxu0 0
  %501 = vmatprep.subr.bf16.mxu0 0
  %502 = vmatpush2.bf16.msra.mxu0 0
  %503 = vmatprep.subr.bf16.mxu0 0
  %504 = vmatpush2.bf16.msra.mxu0 0
  %505 = vmatprep.mubr.bf16.mxu0 0
  %506 = vmatmul.mubr.bf16.gmra.mxu0 %v472
  %v507 = vpop.f32.mrf.mxu0
  %v508 = vadd.f32 0.0, %v507
  %v509 = vpop.f32.mrf.mxu0
  %v510 = vpop.f32.mrf.mxu0
  %v511 = vpop.f32.mrf.mxu0
  %512 = vdwg.mxu0
  %v513 = vadd.f32 %v186, %v508
  %v514 = vtanh.pop %v513
  %v515 = vpack.c.bf16 %v514, %v514
  %516 = vmatprep.subr.bf16.mxu0 0
  %517 = vmatpush1.bf16.msra.mxu0 %v249
  %518 = vmatprep.subr.bf16.mxu0 0
  %519 = vmatpush1.bf16.msra.mxu0 %v248
  %520 = vmatprep.subr.bf16.mxu0 0
  %521 = vmatpush1.bf16.msra.mxu0 %v247
  %522 = vmatprep.subr.bf16.mxu0 0
  %523 = vmatpush1.bf16.msra.mxu0 %v246
  %524 = vmatprep.subr.bf16.mxu0 0
  %525 = vmatpush1.bf16.msra.mxu0 %v245
  %526 = vmatprep.subr.bf16.mxu0 0
  %527 = vmatpush1.bf16.msra.mxu0 %v244
  %528 = vmatprep.subr.bf16.mxu0 0
  %529 = vmatpush1.bf16.msra.mxu0 %v243
  %530 = vmatprep.subr.bf16.mxu0 0
  %531 = vmatpush1.bf16.msra.mxu0 %v242
  %532 = vmatprep.subr.bf16.mxu0 0
  %533 = vmatpush2.bf16.msra.mxu0 0
  %534 = vmatprep.subr.bf16.mxu0 0
  %535 = vmatpush2.bf16.msra.mxu0 0
  %536 = vmatprep.subr.bf16.mxu0 0
  %537 = vmatpush2.bf16.msra.mxu0 0
  %538 = vmatprep.subr.bf16.mxu0 0
  %539 = vmatpush2.bf16.msra.mxu0 0
  %540 = vmatprep.subr.bf16.mxu0 0
  %541 = vmatpush2.bf16.msra.mxu0 0
  %542 = vmatprep.subr.bf16.mxu0 0
  %543 = vmatpush2.bf16.msra.mxu0 0
  %544 = vmatprep.subr.bf16.mxu0 0
  %545 = vmatpush2.bf16.msra.mxu0 0
  %546 = vmatprep.subr.bf16.mxu0 0
  %547 = vmatpush2.bf16.msra.mxu0 0
  %548 = vmatprep.mubr.bf16.mxu0 0
  %549 = vmatmul.mubr.bf16.gmra.mxu0 %v515
  %v550 = vpop.f32.mrf.mxu0
  %v551 = vadd.f32 0.0, %v550
  %v552 = vpop.f32.mrf.mxu0
  %v553 = vpop.f32.mrf.mxu0
  %v554 = vpop.f32.mrf.mxu0
  %555 = vdwg.mxu0
  %v556 = vadd.f32 %v189, %v551
  %v557 = vtanh.pop %v556
  %v558 = vpack.c.bf16 %v299, %v208
  %v559 = vpack.c.bf16 %v385, %v342
  %v560 = vpack.c.bf16 %v471, %v428
  %v561 = vpack.c.bf16 %v557, %v514
  %v562 = vld [vmem:[%s4] sm:$0xf]
  %v563 = vld [vmem:[%s4 + $0x4] sm:$0xf]
  %v564 = vld [vmem:[%s4 + $0x8] sm:$0xf]
  %v565 = vld [vmem:[%s4 + $0xc] sm:$0xf]
  %v566 = vld [vmem:[%s4 + $0x10] sm:$0xf]
  %v567 = vld [vmem:[%s4 + $0x14] sm:$0xf]
  %v568 = vld [vmem:[%s4 + $0x18] sm:$0xf]
  %v569 = vld [vmem:[%s4 + $0x1c] sm:$0xf]
  %v570 = vld [vmem:[%s4 + $0x20] sm:$0xf]
  %v571 = vld [vmem:[%s4 + $0x24] sm:$0xf]
  %v572 = vld [vmem:[%s4 + $0x28] sm:$0xf]
  %v573 = vld [vmem:[%s4 + $0x2c] sm:$0xf]
  %v574 = vld [vmem:[%s4 + $0x30] sm:$0xf]
  %v575 = vld [vmem:[%s4 + $0x34] sm:$0xf]
  %v576 = vld [vmem:[%s4 + $0x38] sm:$0xf]
  %v577 = vld [vmem:[%s4 + $0x3c] sm:$0xf]
  %v578 = vld [vmem:[%s5] sm:$0x1]
  %v580 = vlaneseq
  %v581 = vshrl.u32 %v580, 7
  %v582 = vsub.s32 0, %v581
  %v583 = vrot.slane %v578, %v582
  %v601 = vunpack.c.l.b16 %v562
  %v602 = vunpack.c.l.b16 %v563
  %v603 = vunpack.c.l.b16 %v564
  %v604 = vunpack.c.l.b16 %v565
  %v605 = vunpack.c.l.b16 %v566
  %v606 = vunpack.c.l.b16 %v567
  %v607 = vunpack.c.l.b16 %v568
  %v608 = vunpack.c.l.b16 %v569
  %v609 = vunpack.c.l.b16 %v570
  %v610 = vunpack.c.l.b16 %v571
  %v611 = vunpack.c.l.b16 %v572
  %v612 = vunpack.c.l.b16 %v573
  %v613 = vunpack.c.l.b16 %v574
  %v614 = vunpack.c.l.b16 %v575
  %v615 = vunpack.c.l.b16 %v576
  %v616 = vunpack.c.l.b16 %v577
  %v617 = vpack.c.b16 %v602, %v601
  %v618 = vpack.c.b16 %v604, %v603
  %v619 = vpack.c.b16 %v606, %v605
  %v620 = vpack.c.b16 %v608, %v607
  %v621 = vpack.c.b16 %v610, %v609
  %v622 = vpack.c.b16 %v612, %v611
  %v623 = vpack.c.b16 %v614, %v613
  %v624 = vpack.c.b16 %v616, %v615
  %633 = vmatprep.subr.bf16.mxu0 0
  %634 = vmatpush1.bf16.msra.mxu0 %v624
  %635 = vmatprep.subr.bf16.mxu0 0
  %636 = vmatpush1.bf16.msra.mxu0 %v623
  %637 = vmatprep.subr.bf16.mxu0 0
  %638 = vmatpush1.bf16.msra.mxu0 %v622
  %639 = vmatprep.subr.bf16.mxu0 0
  %640 = vmatpush1.bf16.msra.mxu0 %v621
  %641 = vmatprep.subr.bf16.mxu0 0
  %642 = vmatpush1.bf16.msra.mxu0 %v620
  %643 = vmatprep.subr.bf16.mxu0 0
  %644 = vmatpush1.bf16.msra.mxu0 %v619
  %645 = vmatprep.subr.bf16.mxu0 0
  %646 = vmatpush1.bf16.msra.mxu0 %v618
  %647 = vmatprep.subr.bf16.mxu0 0
  %648 = vmatpush1.bf16.msra.mxu0 %v617
  %649 = vmatprep.subr.bf16.mxu0 0
  %650 = vmatpush2.bf16.msra.mxu0 0
  %651 = vmatprep.subr.bf16.mxu0 0
  %652 = vmatpush2.bf16.msra.mxu0 0
  %653 = vmatprep.subr.bf16.mxu0 0
  %654 = vmatpush2.bf16.msra.mxu0 0
  %655 = vmatprep.subr.bf16.mxu0 0
  %656 = vmatpush2.bf16.msra.mxu0 0
  %657 = vmatprep.subr.bf16.mxu0 0
  %658 = vmatpush2.bf16.msra.mxu0 0
  %659 = vmatprep.subr.bf16.mxu0 0
  %660 = vmatpush2.bf16.msra.mxu0 0
  %661 = vmatprep.subr.bf16.mxu0 0
  %662 = vmatpush2.bf16.msra.mxu0 0
  %663 = vmatprep.subr.bf16.mxu0 0
  %664 = vmatpush2.bf16.msra.mxu0 0
  %665 = vmatprep.mubr.bf16.mxu0 0
  %666 = vmatmul.mubr.bf16.gmra.mxu0 %v558
  %v667 = vpop.f32.mrf.mxu0
  %v668 = vadd.f32 %v583, %v667
  %v669 = vpop.f32.mrf.mxu0
  %v670 = vpop.f32.mrf.mxu0
  %v671 = vadd.f32 %v583, %v670
  %v672 = vpop.f32.mrf.mxu0
  %673 = vmatprep.mubr.bf16.mxu0 0
  %674 = vmatmul.mubr.bf16.gmra.mxu0 %v559
  %v675 = vpop.f32.mrf.mxu0
  %v676 = vadd.f32 %v583, %v675
  %v677 = vpop.f32.mrf.mxu0
  %v678 = vpop.f32.mrf.mxu0
  %v679 = vadd.f32 %v583, %v678
  %v680 = vpop.f32.mrf.mxu0
  %681 = vmatprep.mubr.bf16.mxu0 0
  %682 = vmatmul.mubr.bf16.gmra.mxu0 %v560
  %v683 = vpop.f32.mrf.mxu0
  %v684 = vadd.f32 %v583, %v683
  %v685 = vpop.f32.mrf.mxu0
  %v686 = vpop.f32.mrf.mxu0
  %v687 = vadd.f32 %v583, %v686
  %v688 = vpop.f32.mrf.mxu0
  %689 = vmatprep.mubr.bf16.mxu0 0
  %690 = vmatmul.mubr.bf16.gmra.mxu0 %v561
  %v691 = vpop.f32.mrf.mxu0
  %v692 = vadd.f32 %v583, %v691
  %v693 = vpop.f32.mrf.mxu0
  %v694 = vpop.f32.mrf.mxu0
  %v695 = vadd.f32 %v583, %v694
  %v696 = vpop.f32.mrf.mxu0
  %697 = vdwg.mxu0
  %698 = vst [vmem:[%s6] sm:$0xff] %v668
  %699 = vst [vmem:[%s6 + $0x8] sm:$0xff] %v671
  %700 = vst [vmem:[%s6 + $0x10] sm:$0xff] %v676
  %701 = vst [vmem:[%s6 + $0x18] sm:$0xff] %v679
  %702 = vst [vmem:[%s6 + $0x20] sm:$0xff] %v684
  %703 = vst [vmem:[%s6 + $0x28] sm:$0xff] %v687
  %704 = vst [vmem:[%s6 + $0x30] sm:$0xff] %v692
  %705 = vst [vmem:[%s6 + $0x38] sm:$0xff] %v695
  // Predicated region
  $region26: #{chatbot_forward.1} parent=0 // pred_check
    _
  $region27: #{chatbot_forward.1} parent=0 // pred_check_branch
    %707 = sbr.rel (0) target = $region29
  $region28: #{chatbot_forward.1} parent=0 // pred_region
    _
  $region29: #{chatbot_forward.1} parent=0 // pred_fallthru
    _
  // Predicated region
  $region30: #{chatbot_forward.1} parent=0 // pred_check
    _
  $region31: #{chatbot_forward.1} parent=0 // pred_check_branch
    %709 = sbr.rel (0) target = $region33
  $region32: #{chatbot_forward.1} parent=0 // pred_region
    _
  $region33: #{chatbot_forward.1} parent=0 // pred_fallthru
    _

</llo_original>
